<compile_context>
chip_gen: v5e
topology: v5e:2x2
jax: 0.10.0
libtpu: 0.0.40
codegen_flags: <defaults>
</compile_context>

<pallas_src>
import jax
import jax.numpy as jnp
from jax.experimental import pallas as pl
from jax.experimental.pallas import tpu as pltpu

LOG_STD_MAX = 2.0
LOG_STD_MIN = -20.0

_VMEM_SPEC = pl.BlockSpec(memory_space=pltpu.MemorySpace.VMEM)


def _mlp_body(x_ref, w1_ref, b1_ref, w2_ref, b2_ref):
    """Fused MLP hot path, all f32: matmul -> bias -> ReLU -> matmul -> bias."""
    h = jnp.dot(x_ref[...], w1_ref[...], preferred_element_type=jnp.float32)
    h = jnp.maximum(h + b1_ref[...], 0.0)          # bias + ReLU on the VPU
    o = jnp.dot(h, w2_ref[...], preferred_element_type=jnp.float32)
    return o + b2_ref[...]                         # (B, D_out), f32


def encoder_forward_kernel(x_ref, w1_ref, b1_ref, w2_ref, b2_ref, o_ref):
    o_ref[...] = _mlp_body(x_ref, w1_ref, b1_ref, w2_ref, b2_ref).astype(o_ref.dtype)


def encoder_params_kernel(x_ref, w1_ref, b1_ref, w2_ref, b2_ref, mean_ref, std_ref):
    # Fused epilogue of Encoder.get_params: split / clamp / exp, in-kernel.
    o = _mlp_body(x_ref, w1_ref, b1_ref, w2_ref, b2_ref)
    latent = mean_ref.shape[-1]
    mean = o[:, :latent]
    log_std = jnp.clip(o[:, latent:], LOG_STD_MIN, LOG_STD_MAX)
    mean_ref[...] = mean.astype(mean_ref.dtype)
    std_ref[...] = jnp.exp(log_std).astype(std_ref.dtype)   # exp -> EUP slot


def encoder_forward(x, w1, b1, w2, b2):
    """x: (B, D_in) f32; w1: (D_in, H); b1: (1, H); w2: (H, 2*latent); b2: (1, 2*latent).
    Returns the raw (B, 2*latent) forward output (matches nn.Module.forward)."""
    B = x.shape[0]
    d_out = w2.shape[1]
    return pl.pallas_call(
        encoder_forward_kernel,
        out_shape=jax.ShapeDtypeStruct((B, d_out), jnp.float32),
        # No grid: single invocation, all operands resident in VMEM.
        in_specs=[_VMEM_SPEC] * 5,
        out_specs=_VMEM_SPEC,
    )(x, w1, b1, w2, b2)


def encoder_get_params(x, w1, b1, w2, b2):
    """Fused forward + split/clamp/exp. Returns (mean, std), each (B, latent)."""
    B = x.shape[0]
    latent = w2.shape[1] // 2
    return pl.pallas_call(
        encoder_params_kernel,
        out_shape=(
            jax.ShapeDtypeStruct((B, latent), jnp.float32),
            jax.ShapeDtypeStruct((B, latent), jnp.float32),
        ),
        in_specs=[_VMEM_SPEC] * 5,
        out_specs=(_VMEM_SPEC, _VMEM_SPEC),
    )(x, w1, b1, w2, b2)


if __name__ == "__main__":
    # Shapes implied by the module: input_shape=32, hidden_size=128,
    # latent_size=3 -> output dim 6.  Batch = 8 (sublane multiple).
    B, D_IN, HIDDEN, LATENT = 8, 32, 128, 3
    D_OUT = 2 * LATENT

    key = jax.random.PRNGKey(0)
    k_x, k_w1, k_b1, k_w2, k_b2 = jax.random.split(key, 5)

    x = jax.random.normal(k_x, (B, D_IN), dtype=jnp.float32)
    # Deterministic synthetic parameter init (scaled normal, ~fan-in).
    # Stored once, pre-transposed -- no per-call padding / casting / reshaping.
    w1 = jax.random.normal(k_w1, (D_IN, HIDDEN), dtype=jnp.float32) / jnp.sqrt(D_IN)
    b1 = jax.random.normal(k_b1, (1, HIDDEN), dtype=jnp.float32) * 0.01
    w2 = jax.random.normal(k_w2, (HIDDEN, D_OUT), dtype=jnp.float32) / jnp.sqrt(HIDDEN)
    b2 = jax.random.normal(k_b2, (1, D_OUT), dtype=jnp.float32) * 0.01

    # forward()
    out = jax.block_until_ready(encoder_forward(x, w1, b1, w2, b2))

    # Pure-JAX f32 reference of the same forward pass.
    ref = jnp.maximum(x @ w1 + b1, 0.0) @ w2 + b2
    assert out.shape == (B, D_OUT)
    assert jnp.allclose(out, ref, atol=2e-3, rtol=2e-3)

    # get_params() with the fused split/clamp/exp epilogue.
    mean, std = encoder_get_params(x, w1, b1, w2, b2)
    mean = jax.block_until_ready(mean)
    std = jax.block_until_ready(std)
    ref_mean = ref[:, :LATENT]
    ref_std = jnp.exp(jnp.clip(ref[:, LATENT:], LOG_STD_MIN, LOG_STD_MAX))
    assert mean.shape == (B, LATENT) and std.shape == (B, LATENT)
    assert jnp.allclose(mean, ref_mean, atol=2e-3, rtol=2e-3)
    assert jnp.allclose(std, ref_std, atol=2e-3, rtol=2e-3)

    # TODO(synk): get_distribution constructs a torch.distributions.Normal
    # object; mean/std are produced in-kernel above, the distribution wrapper
    # itself is left to the caller.

    print("KERNEL_OK")
</pallas_src>

<mosaic_0001>
module attributes {stable_mosaic.version = 11 : i64} {
  func.func @encoder_forward_kernel(%arg0: memref<8x32xf32, #tpu.memory_space<vmem>>, %arg1: memref<32x128xf32, #tpu.memory_space<vmem>>, %arg2: memref<1x128xf32, #tpu.memory_space<vmem>>, %arg3: memref<128x6xf32, #tpu.memory_space<vmem>>, %arg4: memref<1x6xf32, #tpu.memory_space<vmem>>, %arg5: memref<8x6xf32, #tpu.memory_space<vmem>>) attributes {dimension_semantics = [], scalar_prefetch = 0 : i64, scratch_operands = 0 : i64, tpu.core_type = #tpu.core_type<tc>} {
    %c0 = arith.constant 0 : index
    %c0_0 = arith.constant 0 : index
    %0 = vector.load %arg0[%c0, %c0_0] : memref<8x32xf32, #tpu.memory_space<vmem>>, vector<8x32xf32>
    %c0_1 = arith.constant 0 : index
    %c0_2 = arith.constant 0 : index
    %1 = vector.load %arg1[%c0_1, %c0_2] : memref<32x128xf32, #tpu.memory_space<vmem>>, vector<32x128xf32>
    %cst = arith.constant dense<0.000000e+00> : vector<8x128xf32>
    %2 = tpu.matmul %0, %1, %cst {dimension_numbers = #tpu.dot_dimension_numbers<[1], [0], [0], [1], [0, 0, 1, 1], [], []>} : vector<8x32xf32>, vector<32x128xf32>, vector<8x128xf32> -> vector<8x128xf32>
    %c0_3 = arith.constant 0 : index
    %c0_4 = arith.constant 0 : index
    %3 = vector.load %arg2[%c0_3, %c0_4] : memref<1x128xf32, #tpu.memory_space<vmem>>, vector<1x128xf32>
    %4 = vector.broadcast %3 : vector<1x128xf32> to vector<8x128xf32>
    %5 = arith.addf %2, %4 : vector<8x128xf32>
    %cst_5 = arith.constant 0.000000e+00 : f32
    %6 = vector.broadcast %cst_5 : f32 to vector<8x128xf32>
    %7 = arith.maximumf %5, %6 : vector<8x128xf32>
    %c0_6 = arith.constant 0 : index
    %c0_7 = arith.constant 0 : index
    %8 = vector.load %arg3[%c0_6, %c0_7] : memref<128x6xf32, #tpu.memory_space<vmem>>, vector<128x6xf32>
    %cst_8 = arith.constant dense<0.000000e+00> : vector<8x6xf32>
    %9 = tpu.matmul %7, %8, %cst_8 {dimension_numbers = #tpu.dot_dimension_numbers<[1], [0], [0], [1], [0, 0, 1, 1], [], []>} : vector<8x128xf32>, vector<128x6xf32>, vector<8x6xf32> -> vector<8x6xf32>
    %c0_9 = arith.constant 0 : index
    %c0_10 = arith.constant 0 : index
    %10 = vector.load %arg4[%c0_9, %c0_10] : memref<1x6xf32, #tpu.memory_space<vmem>>, vector<1x6xf32>
    %11 = vector.broadcast %10 : vector<1x6xf32> to vector<8x6xf32>
    %12 = arith.addf %9, %11 : vector<8x6xf32>
    %c0_11 = arith.constant 0 : index
    %c0_12 = arith.constant 0 : index
    %13 = vector.load %arg5[%c0_11, %c0_12] : memref<8x6xf32, #tpu.memory_space<vmem>>, vector<8x6xf32>
    tpu.vector_store %arg5[%c0_11, %c0_12], %12 {strides = array<i32>} : memref<8x6xf32, #tpu.memory_space<vmem>>, vector<8x6xf32>,
    return
  }
}

</mosaic_0001>

<llo_original>
// kernel: tpu_custom_call.1
$region0: #{tpu_custom_call.1}
  #allocation0 [shape = 'u32[]', space=smem, size = 0x4, offset = 0x4, fixed_abs, tag = 'smem constant byte address 0x4 - core index']
  #allocation1 [shape = 'u32[72,128]{1,0:T(1,128)}', space=vmem, size = 0x9000, scoped, tag = 'internal scratch']
  %s0 = inlined_call_operand.vmem [shape: f32[8,32], index: 0, kind: input, shape index: {}]
  %s1 = inlined_call_operand.vmem [shape: f32[32,128], index: 1, kind: input, shape index: {}]
  %s2 = inlined_call_operand.vmem [shape: f32[1,128], index: 2, kind: input, shape index: {}]
  %s3 = inlined_call_operand.vmem [shape: f32[128,6], index: 3, kind: input, shape index: {}]
  %s4 = inlined_call_operand.vmem [shape: f32[1,6], index: 4, kind: input, shape index: {}]
  %s5 = inlined_call_operand.hbm [shape: f32[8,6], index: 5, kind: output, shape index: {}]
  %s6 = sld [smem:[#allocation0]]
  $region30: #{tpu_custom_call.1} parent=0
    _
  %s8 = ssub.s32 1, %s6
  %s9 = scalar_select 0, %s8, %s6
  $region1: #{tpu_custom_call.1} parent=0
    #allocation2 [shape = 'u8[4096]{0}', space=vmem, size = 0x1000, scoped, tag = 'output window, operand 0, single buffered']
    #allocation3 [shape = 's32[1]{0}', space=sflag, size = 0x4, scoped, tag = 'scoped memory for tpu_custom_call.1']
    %10 = vsyncpa [#allocation3], 0
    // Predicated region
    $region2: #{tpu_custom_call.1} parent=1 // pred_check
      _
    $region3: #{tpu_custom_call.1} parent=1 // pred_check_branch
      %12 = sbr.rel (0) target = $region5
    $region4: #{tpu_custom_call.1} parent=1 // pred_region
      _
    $region5: #{tpu_custom_call.1} parent=1 // pred_fallthru
      _
    // Predicated region
    $region6: #{tpu_custom_call.1} parent=1 // pred_check
      _
    $region7: #{tpu_custom_call.1} parent=1 // pred_check_branch
      %14 = sbr.rel (0) target = $region9
    $region8: #{tpu_custom_call.1} parent=1 // pred_region
      _
    $region9: #{tpu_custom_call.1} parent=1 // pred_fallthru
      _
    // Predicated region
    $region10: #{tpu_custom_call.1} parent=1 // pred_check
      _
    $region11: #{tpu_custom_call.1} parent=1 // pred_check_branch
      %16 = sbr.rel (0) target = $region13
    $region12: #{tpu_custom_call.1} parent=1 // pred_region
      _
    $region13: #{tpu_custom_call.1} parent=1 // pred_fallthru
      _
    // Predicated region
    $region14: #{tpu_custom_call.1} parent=1 // pred_check
      _
    $region15: #{tpu_custom_call.1} parent=1 // pred_check_branch
      %18 = sbr.rel (0) target = $region17
    $region16: #{tpu_custom_call.1} parent=1 // pred_region
      _
    $region17: #{tpu_custom_call.1} parent=1 // pred_fallthru
      _
    // Predicated region
    $region18: #{tpu_custom_call.1} parent=1 // pred_check
      _
    $region19: #{tpu_custom_call.1} parent=1 // pred_check_branch
      %20 = sbr.rel (0) target = $region21
    $region20: #{tpu_custom_call.1} parent=1 // pred_region
      _
    $region21: #{tpu_custom_call.1} parent=1 // pred_fallthru
      _
    %v21 = vld [vmem:[%s0] sm:$0xff]
    %v22 = vld [vmem:[%s1] sm:$0xff]
    %v23 = vld [vmem:[%s1 + $0x8] sm:$0xff]
    %v24 = vld [vmem:[%s1 + $0x10] sm:$0xff]
    %v25 = vld [vmem:[%s1 + $0x18] sm:$0xff]
    %v26 = vld [vmem:[%s2] sm:$0x1]
    %v28 = vperm.slane %v26, 0
    %vm30 = vcmask 261120
    %v32 = vsel %vm30, %v21, 0
    %34 = vmatpush.msra.mxu0 0.0
    %35 = vmatpush.msra.mxu0 0.0
    %36 = vmatpush.msra.mxu0 0.0
    %37 = vmatpush.msra.mxu0 0.0
    %38 = vmatpush.msra.mxu0 0.0
    %39 = vmatpush.msra.mxu0 0.0
    %40 = vmatpush.msra.mxu0 0.0
    %41 = vmatpush.msra.mxu0 0.0
    %42 = vmatpush.msra.mxu0 0.0
    %43 = vmatpush.msra.mxu0 0.0
    %44 = vmatpush.msra.mxu0 0.0
    %45 = vmatpush.msra.mxu0 0.0
    %46 = vmatpush.msra.mxu0 %v25
    %47 = vmatpush.msra.mxu0 %v24
    %48 = vmatpush.msra.mxu0 %v23
    %49 = vmatpush.msra.mxu0 %v22
    %50 = vmatmul.f32.gmra.mxu0 %v32
    %v51 = vpop.f32.mrf.mxu0
    %v52 = vadd.f32 %v28, %v51
    %53 = vdwg.mxu0
    %v54 = vmax.f32 %v52, 0.0
    %v55 = vld [vmem:[%s3] sm:$0xff]
    %v56 = vld [vmem:[%s3 + $0x8] sm:$0xff]
    %v57 = vld [vmem:[%s3 + $0x10] sm:$0xff]
    %v58 = vld [vmem:[%s3 + $0x18] sm:$0xff]
    %v59 = vld [vmem:[%s3 + $0x20] sm:$0xff]
    %v60 = vld [vmem:[%s3 + $0x28] sm:$0xff]
    %v61 = vld [vmem:[%s3 + $0x30] sm:$0xff]
    %v62 = vld [vmem:[%s3 + $0x38] sm:$0xff]
    %v63 = vld [vmem:[%s3 + $0x40] sm:$0xff]
    %v64 = vld [vmem:[%s3 + $0x48] sm:$0xff]
    %v65 = vld [vmem:[%s3 + $0x50] sm:$0xff]
    %v66 = vld [vmem:[%s3 + $0x58] sm:$0xff]
    %v67 = vld [vmem:[%s3 + $0x60] sm:$0xff]
    %v68 = vld [vmem:[%s3 + $0x68] sm:$0xff]
    %v69 = vld [vmem:[%s3 + $0x70] sm:$0xff]
    %v70 = vld [vmem:[%s3 + $0x78] sm:$0xff]
    %v71 = vld [vmem:[%s4] sm:$0x1]
    %v73 = vperm.slane %v71, 0
    %75 = vmatpush.msra.mxu0 %v70
    %76 = vmatpush.msra.mxu0 %v69
    %77 = vmatpush.msra.mxu0 %v68
    %78 = vmatpush.msra.mxu0 %v67
    %79 = vmatpush.msra.mxu0 %v66
    %80 = vmatpush.msra.mxu0 %v65
    %81 = vmatpush.msra.mxu0 %v64
    %82 = vmatpush.msra.mxu0 %v63
    %83 = vmatpush.msra.mxu0 %v62
    %84 = vmatpush.msra.mxu0 %v61
    %85 = vmatpush.msra.mxu0 %v60
    %86 = vmatpush.msra.mxu0 %v59
    %87 = vmatpush.msra.mxu0 %v58
    %88 = vmatpush.msra.mxu0 %v57
    %89 = vmatpush.msra.mxu0 %v56
    %90 = vmatpush.msra.mxu0 %v55
    %91 = vmatmul.f32.gmra.mxu0 %v54
    %v92 = vpop.f32.mrf.mxu0
    %v93 = vadd.f32 %v73, %v92
    %94 = vdwg.mxu0
    %vm95 = vcmask 48128
    %96 = vst.msk [vmem:[#allocation2] sm:$0xff] %vm95, %v93
    // Predicated region
    $region22: #{tpu_custom_call.1} parent=1 // pred_check
      _
    $region23: #{tpu_custom_call.1} parent=1 // pred_check_branch
      %98 = sbr.rel (0) target = $region25
    $region24: #{tpu_custom_call.1} parent=1 // pred_region
      %100 = vsyncadd [#allocation3], 0
      %s102 = sshll.u32 [#allocation2], 4
      %s103 = int_to_ptr.vmem [resolvable:$true] %s102
      %s104 = sshll.u32 %s5, 4
      %s105 = int_to_ptr.hbm [resolvable:$true] %s104
      %107 = dma.vmem_to_hbm [thread:$0]  %s103, 128, %s105, [#allocation3]
    $region25: #{tpu_custom_call.1} parent=1 // pred_fallthru
      _
    // Predicated region
    $region26: #{tpu_custom_call.1} parent=1 // pred_check
      _
    $region27: #{tpu_custom_call.1} parent=1 // pred_check_branch
      %109 = sbr.rel (0) target = $region29
    $region28: #{tpu_custom_call.1} parent=1 // pred_region
      %111 = dma.done [#allocation3], 128
    $region29: #{tpu_custom_call.1} parent=1 // pred_fallthru
      _
    %112 = vsyncpa [#allocation3], 1

</llo_original>
